<compile_context>
chip_gen: v6e
topology: v6e:2x2x1
jax: 0.10.0
libtpu: 0.0.40
codegen_flags: <defaults>
</compile_context>

<pallas_src>
import jax
import jax.numpy as jnp
from jax.experimental import pallas as pl
from jax.experimental.pallas import tpu as pltpu

_SQRT_HALF = 0.7071067811865476


def _round_up(x, m):
    return (x + m - 1) // m * m


def _vmem_budget_bytes():
    """~75% of physical VMEM (96 MiB on v5e/v6e, 48 MiB on v7x's 64 MiB)."""
    try:
        info = pltpu.get_tpu_info()
        cap = None
        for attr in ("vmem_capacity_bytes", "vmem_bytes", "vmem_size_bytes"):
            cap = getattr(info, attr, None)
            if cap:
                break
        if cap:
            return int(cap) * 3 // 4
    except Exception:
        pass
    return 48 * 1024 * 1024  # safe on every generation (v7x has 64 MiB/TC)


def _gelu_f32(h):
    # Exact GELU in f32: 0.5 * h * (1 + erf(h / sqrt(2)))  (EUP erf).
    return 0.5 * h * (1.0 + jax.lax.erf(h * jnp.float32(_SQRT_HALF)))


# ---------------------------------------------------------------------------
# Kernels
# ---------------------------------------------------------------------------
def mlp_resident_kernel(x_ref, w1_ref, b1_ref, w2_ref, b2_ref, o_ref):
    """Whole MLP for one row tile; W1/W2 stay VMEM-resident across the grid.

    x_ref : (TM, W)   w1_ref: (W, H)   b1_ref: (1, H)
    w2_ref: (H, W)    b2_ref: (1, W)   o_ref : (TM, W)
    """
    h = jnp.dot(x_ref[...], w1_ref[...], preferred_element_type=jnp.float32)
    h = h + b1_ref[...].astype(jnp.float32)
    g = _gelu_f32(h)
    out = jnp.dot(g.astype(w2_ref.dtype), w2_ref[...],
                  preferred_element_type=jnp.float32)
    out = out + b2_ref[...].astype(jnp.float32)
    o_ref[...] = out.astype(o_ref.dtype)


def mlp_tiled_kernel(x_ref, w1_ref, b1_ref, w2_ref, b2_ref, o_ref, acc_ref):
    """One (row-tile, hidden-chunk) step with a resident f32 VMEM accumulator.

    x_ref : (TM, W)   w1_ref: (W, TH)  b1_ref: (1, H)  (full; sliced in-kernel)
    w2_ref: (TH, W)   b2_ref: (1, W)   o_ref : (TM, W) acc_ref: (TM, W) f32
    """
    h_idx = pl.program_id(1)
    th = w1_ref.shape[1]

    # Fold the c_proj bias into the accumulator init (no epilogue add).
    @pl.when(h_idx == 0)
    def _():
        acc_ref[...] = jnp.broadcast_to(
            b2_ref[...].astype(jnp.float32), acc_ref.shape)

    # b1 lives in VMEM as one full (1, H) block; slice out this chunk.
    if b1_ref.shape[1] == th:
        b1c = b1_ref[...]
    else:
        start = pl.multiple_of(h_idx * th, 128)
        b1c = b1_ref[:, pl.ds(start, th)]

    # c_fc on this hidden chunk (bf16 MXU operands, f32 accumulation).
    h = jnp.dot(x_ref[...], w1_ref[...], preferred_element_type=jnp.float32)
    h = h + b1c.astype(jnp.float32)
    g = _gelu_f32(h)

    # Partial c_proj contribution (cast back to weight dtype for the MXU).
    acc_ref[...] += jnp.dot(g.astype(w2_ref.dtype), w2_ref[...],
                            preferred_element_type=jnp.float32)

    @pl.when(h_idx == pl.num_programs(1) - 1)
    def _():
        o_ref[...] = acc_ref[...].astype(o_ref.dtype)


# ---------------------------------------------------------------------------
# VMEM sizing helpers
# ---------------------------------------------------------------------------
def _resident_vmem_bytes(tm, W, H, cdsz, osz):
    return (2 * tm * W * cdsz              # x tiles (double buffered)
            + 2 * tm * W * osz             # out tiles
            + 2 * (W * H + H * W) * cdsz   # W1 + W2 (budget 2 buffers each)
            + 2 * (H + W) * 4              # biases (f32)
            + tm * H * (4 + cdsz)          # h (f32) + g intermediates
            + tm * W * 4)                  # f32 result before store-cast


def _tiled_vmem_bytes(tm, th, W, H, cdsz, osz):
    return (2 * tm * W * cdsz
            + 2 * (W * th + th * W) * cdsz
            + 2 * tm * W * osz
            + 2 * (H + W) * 4
            + tm * W * 4                   # f32 accumulator scratch
            + tm * th * (4 + cdsz)         # h (f32) + g intermediates
            + tm * W * 4)                  # partial dot result


def _largest_div_mult128(H, cap):
    """Largest multiple of 128 that divides H, at most cap (else H)."""
    if H % 128 != 0:
        return H
    best = 128
    t = 128
    hi = min(cap, H)
    while t <= hi:
        if H % t == 0:
            best = t
        t += 128
    return best


# ---------------------------------------------------------------------------
# Wrapper
# ---------------------------------------------------------------------------
def mlp_pallas(x, w1, b1, w2, b2, *, compute_dtype=jnp.bfloat16,
               tm=512, th=None, force_tiled=False, vmem_budget_bytes=None):
    """x: [M, W]; w1: [W, 4W] ([in,out]); b1: [1,4W]; w2: [4W, W]; b2: [1,W]."""
    M, W = x.shape
    H = w1.shape[1]
    out_dtype = x.dtype

    budget = vmem_budget_bytes or _vmem_budget_bytes()

    # bf16 MXU operands by default; cast HBM-side so the DMAs shrink too.
    cdt = jnp.dtype(compute_dtype)
    x_c = x if x.dtype == cdt else x.astype(cdt)
    w1_c = w1 if w1.dtype == cdt else w1.astype(cdt)
    w2_c = w2 if w2.dtype == cdt else w2.astype(cdt)
    b1_c = b1.astype(jnp.float32)
    b2_c = b2.astype(jnp.float32)
    cdsz = cdt.itemsize
    osz = jnp.dtype(out_dtype).itemsize

    # Row tile: big (amortizes per-step overhead and weight re-streaming),
    # 16-aligned (bf16 packs 2 rows per sublane), and split so the "parallel"
    # row axis has >=2 tiles when there's enough work (v7x has 2 TCs).
    tm = max(16, min(tm, _round_up(M, 16)))
    M_pad = _round_up(M, tm)
    if M_pad // tm < 2 and M_pad >= 32:
        tm = _round_up(-(-M_pad // 2), 16)
        M_pad = _round_up(M, tm)

    use_resident = (not force_tiled) and (
        _resident_vmem_bytes(tm, W, H, cdsz, osz) <= budget)

    if not use_resident:
        # Hidden-chunk: largest multiple of 128 dividing H (user th if valid).
        if (th is None or th <= 0 or H % th != 0
                or (H % 128 == 0 and th % 128 != 0)):
            th = _largest_div_mult128(H, 512)
        # Shrink tm, then th, until the tile set fits the VMEM budget.
        while _tiled_vmem_bytes(tm, th, W, H, cdsz, osz) > budget and tm > 16:
            tm = max(16, _round_up(tm // 2, 16))
        while _tiled_vmem_bytes(tm, th, W, H, cdsz, osz) > budget and th > 128:
            cand = th - 128
            while cand > 128 and H % cand != 0:
                cand -= 128
            if cand < 128 or H % cand != 0:
                break
            th = cand
        M_pad = _round_up(M, tm)

    if M_pad != M:
        x_c = jnp.pad(x_c, ((0, M_pad - M), (0, 0)))

    n_row = M_pad // tm
    w_bytes = (w1_c.size + w2_c.size) * cdsz
    cost = pl.CostEstimate(
        flops=4 * M_pad * W * H,                       # two matmuls: 2*M*W*H each
        transcendentals=M_pad * H,                     # erf
        bytes_accessed=(M_pad * W * cdsz + M_pad * W * osz
                        + (1 if use_resident else n_row) * w_bytes
                        + (b1_c.size + b2_c.size) * 4),
    )

    if use_resident:
        grid = (n_row,)
        in_specs = [
            pl.BlockSpec((tm, W), lambda i: (i, 0)),   # x row tile
            pl.BlockSpec((W, H), lambda i: (0, 0)),    # W1 (resident)
            pl.BlockSpec((1, H), lambda i: (0, 0)),    # b1 (resident)
            pl.BlockSpec((H, W), lambda i: (0, 0)),    # W2 (resident)
            pl.BlockSpec((1, W), lambda i: (0, 0)),    # b2 (resident)
        ]
        out_specs = pl.BlockSpec((tm, W), lambda i: (i, 0))
        scratch_shapes = []
        kernel = mlp_resident_kernel
        dim_sem = ("parallel",)
    else:
        grid = (n_row, H // th)
        in_specs = [
            pl.BlockSpec((tm, W), lambda i, h: (i, 0)),   # x row tile
            pl.BlockSpec((W, th), lambda i, h: (0, h)),   # W1 hidden chunk
            pl.BlockSpec((1, H), lambda i, h: (0, 0)),    # b1 (full, resident)
            pl.BlockSpec((th, W), lambda i, h: (h, 0)),   # W2 hidden chunk
            pl.BlockSpec((1, W), lambda i, h: (0, 0)),    # b2 (full, resident)
        ]
        out_specs = pl.BlockSpec((tm, W), lambda i, h: (i, 0))
        scratch_shapes = [pltpu.VMEM((tm, W), jnp.float32)]
        kernel = mlp_tiled_kernel
        dim_sem = ("parallel", "arbitrary")

    out = pl.pallas_call(
        kernel,
        out_shape=jax.ShapeDtypeStruct((M_pad, W), out_dtype),
        grid_spec=pltpu.PrefetchScalarGridSpec(
            num_scalar_prefetch=0,
            grid=grid,
            in_specs=in_specs,
            out_specs=out_specs,
            scratch_shapes=scratch_shapes,
        ),
        compiler_params=pltpu.CompilerParams(
            dimension_semantics=dim_sem,
            vmem_limit_bytes=budget,
        ),
        cost_estimate=cost,
    )(x_c, w1_c, b1_c, w2_c, b2_c)

    return out[:M] if M_pad != M else out


class MLPParams:
    """Deterministic parameters mirroring the PyTorch MLP __init__ (f32 storage)."""

    def __init__(self, key, width, init_scale, dtype=jnp.float32):
        k1, k2 = jax.random.split(key)
        hidden = width * 4
        # PyTorch nn.Linear stores weight as [out, in]; we keep the transpose
        # [in, out] so the kernel computes x @ W directly.
        self.w1 = (jax.random.normal(k1, (width, hidden)) * init_scale).astype(dtype)
        self.b1 = jnp.zeros((1, hidden), dtype)
        self.w2 = (jax.random.normal(k2, (hidden, width)) * init_scale).astype(dtype)
        self.b2 = jnp.zeros((1, width), dtype)


def mlp_forward(x_bsw, params, *, compute_dtype=jnp.bfloat16, tm=512, th=None,
                force_tiled=False):
    """x_bsw: [batch, seq, width] -> [batch, seq, width]."""
    B, S, W = x_bsw.shape
    x2d = x_bsw.reshape(B * S, W)
    out2d = mlp_pallas(x2d, params.w1, params.b1, params.w2, params.b2,
                       compute_dtype=compute_dtype, tm=tm, th=th,
                       force_tiled=force_tiled)
    return out2d.reshape(B, S, W)


def mlp_reference(x_bsw, params):
    hi = jax.lax.Precision.HIGHEST
    h = jnp.einsum("bsw,wh->bsh", x_bsw, params.w1, precision=hi) + params.b1[0]
    g = 0.5 * h * (1.0 + jax.lax.erf(h * jnp.float32(_SQRT_HALF)))
    return jnp.einsum("bsh,hw->bsw", g, params.w2, precision=hi) + params.b2[0]


if __name__ == "__main__":
    init_scale = 0.02
    key = jax.random.PRNGKey(0)

    # width is a multiple of 128 so all blocks are lane-dense (unmasked stores).
    # Case 1 hits the weight-resident fast path; case 2 forces the tiled
    # accumulator path (th=256 -> two hidden chunks) and exercises row padding
    # (M=60 -> padded to 64) plus the in-kernel b1 slice.
    cases = [
        (2, 8, 128, False, None),
        (3, 20, 128, True, 256),
    ]
    for batch, seq, width, force_tiled, th in cases:
        key, kp, kx = jax.random.split(key, 3)
        params = MLPParams(kp, width, init_scale, dtype=jnp.float32)
        x = jax.random.normal(kx, (batch, seq, width), dtype=jnp.float32)

        out = mlp_forward(x, params, force_tiled=force_tiled, th=th)
        out = jax.block_until_ready(out)

        ref = mlp_reference(x, params)
        assert out.shape == (batch, seq, width)
        # bf16 MXU operands vs f32 HIGHEST-precision reference -> loosened tol.
        assert jnp.allclose(out, ref, atol=1e-2, rtol=5e-2), (
            float(jnp.max(jnp.abs(out - ref))))

    print("KERNEL_OK")
</pallas_src>

<mosaic_0001>
module attributes {stable_mosaic.version = 11 : i64} {
  func.func @mlp_resident_kernel(%arg0: i32, %arg1: memref<16x128xbf16, #tpu.memory_space<vmem>>, %arg2: memref<128x512xbf16, #tpu.memory_space<vmem>>, %arg3: memref<1x512xf32, #tpu.memory_space<vmem>>, %arg4: memref<512x128xbf16, #tpu.memory_space<vmem>>, %arg5: memref<1x128xf32, #tpu.memory_space<vmem>>, %arg6: memref<16x128xf32, #tpu.memory_space<vmem>>) attributes {dimension_semantics = [#tpu.dimension_semantics<parallel>], iteration_bounds = array<i64: 1>, scalar_prefetch = 0 : i64, scratch_operands = 0 : i64, tpu.core_type = #tpu.core_type<tc>, window_params = [{transform_indices = @transform_0, window_bounds = array<i64: 16, 128>}, {pipeline_mode = #tpu.pipeline_mode<synchronous>, transform_indices = @transform_1, window_bounds = array<i64: 128, 512>}, {pipeline_mode = #tpu.pipeline_mode<synchronous>, transform_indices = @transform_2, window_bounds = array<i64: 1, 512>}, {pipeline_mode = #tpu.pipeline_mode<synchronous>, transform_indices = @transform_3, window_bounds = array<i64: 512, 128>}, {pipeline_mode = #tpu.pipeline_mode<synchronous>, transform_indices = @transform_4, window_bounds = array<i64: 1, 128>}, {transform_indices = @transform_5, window_bounds = array<i64: 16, 128>}]} {
    %c0 = arith.constant 0 : index
    %c0_0 = arith.constant 0 : index
    %0 = vector.load %arg1[%c0, %c0_0] : memref<16x128xbf16, #tpu.memory_space<vmem>>, vector<16x128xbf16>
    %c0_1 = arith.constant 0 : index
    %c0_2 = arith.constant 0 : index
    %1 = vector.load %arg2[%c0_1, %c0_2] : memref<128x512xbf16, #tpu.memory_space<vmem>>, vector<128x512xbf16>
    %cst = arith.constant dense<0.000000e+00> : vector<16x512xf32>
    %2 = tpu.matmul %0, %1, %cst {dimension_numbers = #tpu.dot_dimension_numbers<[1], [0], [0], [1], [0, 0, 1, 1], [], []>} : vector<16x128xbf16>, vector<128x512xbf16>, vector<16x512xf32> -> vector<16x512xf32>
    %c0_3 = arith.constant 0 : index
    %c0_4 = arith.constant 0 : index
    %3 = vector.load %arg3[%c0_3, %c0_4] : memref<1x512xf32, #tpu.memory_space<vmem>>, vector<1x512xf32>
    %4 = vector.broadcast %3 : vector<1x512xf32> to vector<16x512xf32>
    %5 = arith.addf %2, %4 : vector<16x512xf32>
    %cst_5 = arith.constant 5.000000e-01 : f32
    %6 = vector.broadcast %cst_5 : f32 to vector<16x512xf32>
    %7 = arith.mulf %6, %5 : vector<16x512xf32>
    %cst_6 = arith.constant 0.707106769 : f32
    %8 = vector.broadcast %cst_6 : f32 to vector<16x512xf32>
    %9 = arith.mulf %5, %8 : vector<16x512xf32>
    %10 = math.erf %9 : vector<16x512xf32>
    %cst_7 = arith.constant 1.000000e+00 : f32
    %11 = vector.broadcast %cst_7 : f32 to vector<16x512xf32>
    %12 = arith.addf %11, %10 : vector<16x512xf32>
    %13 = arith.mulf %7, %12 : vector<16x512xf32>
    %14 = arith.truncf %13 : vector<16x512xf32> to vector<16x512xbf16>
    %c0_8 = arith.constant 0 : index
    %c0_9 = arith.constant 0 : index
    %15 = vector.load %arg4[%c0_8, %c0_9] : memref<512x128xbf16, #tpu.memory_space<vmem>>, vector<512x128xbf16>
    %cst_10 = arith.constant dense<0.000000e+00> : vector<16x128xf32>
    %16 = tpu.matmul %14, %15, %cst_10 {dimension_numbers = #tpu.dot_dimension_numbers<[1], [0], [0], [1], [0, 0, 1, 1], [], []>} : vector<16x512xbf16>, vector<512x128xbf16>, vector<16x128xf32> -> vector<16x128xf32>
    %c0_11 = arith.constant 0 : index
    %c0_12 = arith.constant 0 : index
    %17 = vector.load %arg5[%c0_11, %c0_12] : memref<1x128xf32, #tpu.memory_space<vmem>>, vector<1x128xf32>
    %18 = vector.broadcast %17 : vector<1x128xf32> to vector<16x128xf32>
    %19 = arith.addf %16, %18 : vector<16x128xf32>
    %c0_13 = arith.constant 0 : index
    %c0_14 = arith.constant 0 : index
    %20 = vector.load %arg6[%c0_13, %c0_14] : memref<16x128xf32, #tpu.memory_space<vmem>>, vector<16x128xf32>
    tpu.vector_store %arg6[%c0_13, %c0_14], %19 {strides = array<i32>} : memref<16x128xf32, #tpu.memory_space<vmem>>, vector<16x128xf32>,
    return
  }
  func.func @transform_0(%arg0: i32) -> (i32, i32) {
    %c0_i32 = arith.constant 0 : i32
    %c0_i32_0 = arith.constant 0 : i32
    return %arg0, %c0_i32 : i32, i32
  }
  func.func @transform_1(%arg0: i32) -> (i32, i32) {
    %c0_i32 = arith.constant 0 : i32
    %c0_i32_0 = arith.constant 0 : i32
    %c0_i32_1 = arith.constant 0 : i32
    return %c0_i32, %c0_i32_0 : i32, i32
  }
  func.func @transform_2(%arg0: i32) -> (i32, i32) {
    %c0_i32 = arith.constant 0 : i32
    %c0_i32_0 = arith.constant 0 : i32
    %c0_i32_1 = arith.constant 0 : i32
    return %c0_i32, %c0_i32_0 : i32, i32
  }
  func.func @transform_3(%arg0: i32) -> (i32, i32) {
    %c0_i32 = arith.constant 0 : i32
    %c0_i32_0 = arith.constant 0 : i32
    %c0_i32_1 = arith.constant 0 : i32
    return %c0_i32, %c0_i32_0 : i32, i32
  }
  func.func @transform_4(%arg0: i32) -> (i32, i32) {
    %c0_i32 = arith.constant 0 : i32
    %c0_i32_0 = arith.constant 0 : i32
    %c0_i32_1 = arith.constant 0 : i32
    return %c0_i32, %c0_i32_0 : i32, i32
  }
  func.func @transform_5(%arg0: i32) -> (i32, i32) {
    %c0_i32 = arith.constant 0 : i32
    %c0_i32_0 = arith.constant 0 : i32
    return %arg0, %c0_i32 : i32, i32
  }
}

</mosaic_0001>

<llo_original>
// kernel: tpu_custom_call.1
$region0: #{tpu_custom_call.1}
  #allocation0 [shape = 'u32[]', space=smem, size = 0x4, offset = 0x4, fixed_abs, tag = 'smem constant byte address 0x4 - core index']
  #allocation1 [shape = 'u32[144,128]{1,0:T(1,128)}', space=vmem, size = 0x12000, scoped, tag = 'internal scratch']
  %s0 = inlined_call_operand.hbm [shape: bf16[16,128], index: 0, kind: input, shape index: {}]
  %s1 = inlined_call_operand.hbm [shape: bf16[128,512], index: 1, kind: input, shape index: {}]
  %s2 = inlined_call_operand.hbm [shape: f32[1,512], index: 2, kind: input, shape index: {}]
  %s3 = inlined_call_operand.hbm [shape: bf16[512,128], index: 3, kind: input, shape index: {}]
  %s4 = inlined_call_operand.vmem [shape: f32[1,128], index: 4, kind: input, shape index: {}]
  %s5 = inlined_call_operand.hbm [shape: f32[16,128], index: 5, kind: output, shape index: {}]
  %s6 = sld [smem:[#allocation0]]
  $region46: #{tpu_custom_call.1} parent=0
    _
  %s8 = ssub.s32 1, %s6
  %s9 = scalar_select 0, %s8, %s6
  $region1: #{tpu_custom_call.1} parent=0
    #allocation2 [shape = 'u8[4096]{0}', space=vmem, size = 0x1000, scoped, tag = 'input window, operand 0, single buffered']
    #allocation3 [shape = 's32[1]{0}', space=sflag, size = 0x4, scoped, tag = 'scoped memory for tpu_custom_call.1']
    #allocation4 [shape = 's32[1]{0}', space=sflag, size = 0x4, scoped, tag = 'scoped memory for tpu_custom_call.1']
    #allocation5 [shape = 'u8[131072]{0}', space=vmem, size = 0x20000, scoped, tag = 'input window, operand 1, single buffered']
    #allocation6 [shape = 's32[1]{0}', space=sflag, size = 0x4, scoped, tag = 'scoped memory for tpu_custom_call.1']
    #allocation7 [shape = 'u8[2048]{0}', space=vmem, size = 0x800, scoped, tag = 'input window, operand 2, single buffered']
    #allocation8 [shape = 'u8[131072]{0}', space=vmem, size = 0x20000, scoped, tag = 'input window, operand 3, single buffered']
    #allocation9 [shape = 's32[1]{0}', space=sflag, size = 0x4, scoped, tag = 'scoped memory for tpu_custom_call.1']
    #allocation10 [shape = 'u8[8192]{0}', space=vmem, size = 0x2000, scoped, tag = 'output window, operand 0, single buffered']
    %10 = vsyncpa [#allocation3], 0
    %11 = vsyncpa [#allocation6], 0
    %12 = vsyncpa [#allocation9], 0
    %13 = vsyncpa [#allocation4], 0
    // Predicated region
    $region2: #{tpu_custom_call.1} parent=1 // pred_check
      _
    $region3: #{tpu_custom_call.1} parent=1 // pred_check_branch
      %15 = sbr.rel (0) target = $region5
    $region4: #{tpu_custom_call.1} parent=1 // pred_region
      %s17 = ssub.s32 128, 128
      %18 = vsyncadd [#allocation3], %s17
      %s19 = sshll.u32 [#allocation2], 4
      %s20 = int_to_ptr.vmem [resolvable:$true] %s19
      %25 = dma.hbm_to_vmem [thread:$0]  %s0, 128, %s20, [#allocation3], 64, 64, 4
    $region5: #{tpu_custom_call.1} parent=1 // pred_fallthru
      _
    // Predicated region
    $region6: #{tpu_custom_call.1} parent=1 // pred_check
      _
    $region7: #{tpu_custom_call.1} parent=1 // pred_check_branch
      %27 = sbr.rel (0) target = $region9
    $region8: #{tpu_custom_call.1} parent=1 // pred_region
      %s29 = ssub.s32 4096, 4096
      %30 = vsyncadd [#allocation6], %s29
      %s31 = sshll.u32 [#allocation5], 4
      %s32 = int_to_ptr.vmem [resolvable:$true] %s31
      %37 = dma.hbm_to_vmem [thread:$0]  %s1, 4096, %s32, [#allocation6], 256, 256, 16
    $region9: #{tpu_custom_call.1} parent=1 // pred_fallthru
      _
    // Predicated region
    $region10: #{tpu_custom_call.1} parent=1 // pred_check
      _
    $region11: #{tpu_custom_call.1} parent=1 // pred_check_branch
      %39 = sbr.rel (0) target = $region13
    $region12: #{tpu_custom_call.1} parent=1 // pred_region
      %s41 = ssub.s32 64, 64
      %42 = vsyncadd [#allocation6], %s41
      %s44 = sshll.u32 [#allocation7], 4
      %s45 = int_to_ptr.vmem [resolvable:$true] %s44
      %47 = dma.hbm_to_vmem [thread:$0]  %s2, 64, %s45, [#allocation6]
    $region13: #{tpu_custom_call.1} parent=1 // pred_fallthru
      _
    // Predicated region
    $region14: #{tpu_custom_call.1} parent=1 // pred_check
      _
    $region15: #{tpu_custom_call.1} parent=1 // pred_check_branch
      %49 = sbr.rel (0) target = $region17
    $region16: #{tpu_custom_call.1} parent=1 // pred_region
      %s51 = ssub.s32 4096, 4096
      %52 = vsyncadd [#allocation9], %s51
      %s53 = sshll.u32 [#allocation8], 4
      %s54 = int_to_ptr.vmem [resolvable:$true] %s53
      %59 = dma.hbm_to_vmem [thread:$0]  %s3, 4096, %s54, [#allocation9], 64, 64, 4
    $region17: #{tpu_custom_call.1} parent=1 // pred_fallthru
      _
    // Predicated region
    $region18: #{tpu_custom_call.1} parent=1 // pred_check
      _
    $region19: #{tpu_custom_call.1} parent=1 // pred_check_branch
      %61 = sbr.rel (0) target = $region21
    $region20: #{tpu_custom_call.1} parent=1 // pred_region
      _
    $region21: #{tpu_custom_call.1} parent=1 // pred_fallthru
      _
    // Predicated region
    $region22: #{tpu_custom_call.1} parent=1 // pred_check
      _
    $region23: #{tpu_custom_call.1} parent=1 // pred_check_branch
      %63 = sbr.rel (0) target = $region25
    $region24: #{tpu_custom_call.1} parent=1 // pred_region
      %64 = dma.done [#allocation3], 128
    $region25: #{tpu_custom_call.1} parent=1 // pred_fallthru
      _
    // Predicated region
    $region26: #{tpu_custom_call.1} parent=1 // pred_check
      _
    $region27: #{tpu_custom_call.1} parent=1 // pred_check_branch
      %66 = sbr.rel (0) target = $region29
    $region28: #{tpu_custom_call.1} parent=1 // pred_region
      %67 = dma.done [#allocation6], 4096
    $region29: #{tpu_custom_call.1} parent=1 // pred_fallthru
      _
    // Predicated region
    $region30: #{tpu_custom_call.1} parent=1 // pred_check
      _
    $region31: #{tpu_custom_call.1} parent=1 // pred_check_branch
      %69 = sbr.rel (0) target = $region33
    $region32: #{tpu_custom_call.1} parent=1 // pred_region
      %70 = dma.done [#allocation6], 64
    $region33: #{tpu_custom_call.1} parent=1 // pred_fallthru
      _
    // Predicated region
    $region34: #{tpu_custom_call.1} parent=1 // pred_check
      _
    $region35: #{tpu_custom_call.1} parent=1 // pred_check_branch
      %72 = sbr.rel (0) target = $region37
    $region36: #{tpu_custom_call.1} parent=1 // pred_region
      %73 = dma.done [#allocation9], 4096
    $region37: #{tpu_custom_call.1} parent=1 // pred_fallthru
      _
    %v75 = vld [vmem:[#allocation2] sm:$0xf]
    %v76 = vld [vmem:[#allocation2 + $0x4] sm:$0xf]
    %v77 = vld [vmem:[#allocation5] sm:$0xff]
    %v78 = vld [vmem:[#allocation5 + $0x8] sm:$0xff]
    %v79 = vld [vmem:[#allocation5 + $0x10] sm:$0xff]
    %v80 = vld [vmem:[#allocation5 + $0x18] sm:$0xff]
    %v81 = vld [vmem:[#allocation5 + $0x20] sm:$0xff]
    %v82 = vld [vmem:[#allocation5 + $0x28] sm:$0xff]
    %v83 = vld [vmem:[#allocation5 + $0x30] sm:$0xff]
    %v84 = vld [vmem:[#allocation5 + $0x38] sm:$0xff]
    %v85 = vld [vmem:[#allocation5 + $0x40] sm:$0xff]
    %v86 = vld [vmem:[#allocation5 + $0x48] sm:$0xff]
    %v87 = vld [vmem:[#allocation5 + $0x50] sm:$0xff]
    %v88 = vld [vmem:[#allocation5 + $0x58] sm:$0xff]
    %v89 = vld [vmem:[#allocation5 + $0x60] sm:$0xff]
    %v90 = vld [vmem:[#allocation5 + $0x68] sm:$0xff]
    %v91 = vld [vmem:[#allocation5 + $0x70] sm:$0xff]
    %v92 = vld [vmem:[#allocation5 + $0x78] sm:$0xff]
    %v93 = vld [vmem:[#allocation5 + $0x80] sm:$0xff]
    %v94 = vld [vmem:[#allocation5 + $0x88] sm:$0xff]
    %v95 = vld [vmem:[#allocation5 + $0x90] sm:$0xff]
    %v96 = vld [vmem:[#allocation5 + $0x98] sm:$0xff]
    %v97 = vld [vmem:[#allocation5 + $0xa0] sm:$0xff]
    %v98 = vld [vmem:[#allocation5 + $0xa8] sm:$0xff]
    %v99 = vld [vmem:[#allocation5 + $0xb0] sm:$0xff]
    %v100 = vld [vmem:[#allocation5 + $0xb8] sm:$0xff]
    %v101 = vld [vmem:[#allocation5 + $0xc0] sm:$0xff]
    %v102 = vld [vmem:[#allocation5 + $0xc8] sm:$0xff]
    %v103 = vld [vmem:[#allocation5 + $0xd0] sm:$0xff]
    %v104 = vld [vmem:[#allocation5 + $0xd8] sm:$0xff]
    %v105 = vld [vmem:[#allocation5 + $0xe0] sm:$0xff]
    %v106 = vld [vmem:[#allocation5 + $0xe8] sm:$0xff]
    %v107 = vld [vmem:[#allocation5 + $0xf0] sm:$0xff]
    %v108 = vld [vmem:[#allocation5 + $0xf8] sm:$0xff]
    %v109 = vld [vmem:[#allocation7] sm:$0xf]
    %v111 = vlaneseq
    %v112 = vshrl.u32 %v111, 7
    %v113 = vsub.s32 0, %v112
    %v114 = vrot.slane %v109, %v113
    %v115 = vlaneseq
    %v116 = vshrl.u32 %v115, 7
    %v117 = vsub.s32 1, %v116
    %v118 = vrot.slane %v109, %v117
    %v119 = vlaneseq
    %v120 = vshrl.u32 %v119, 7
    %v121 = vsub.s32 2, %v120
    %v122 = vrot.slane %v109, %v121
    %v123 = vlaneseq
    %v124 = vshrl.u32 %v123, 7
    %v125 = vsub.s32 3, %v124
    %v126 = vrot.slane %v109, %v125
    %v133 = vunpack.c.l.b16 %v75
    %v134 = vunpack.c.l.b16 %v76
    %v135 = vpack.c.b16 %v134, %v133
    %v169 = vunpack.c.l.b16 %v77
    %v170 = vunpack.c.h.b16 %v77
    %v171 = vunpack.c.l.b16 %v78
    %v172 = vunpack.c.h.b16 %v78
    %v173 = vunpack.c.l.b16 %v79
    %v174 = vunpack.c.h.b16 %v79
    %v175 = vunpack.c.l.b16 %v80
    %v176 = vunpack.c.h.b16 %v80
    %v177 = vunpack.c.l.b16 %v81
    %v178 = vunpack.c.h.b16 %v81
    %v179 = vunpack.c.l.b16 %v82
    %v180 = vunpack.c.h.b16 %v82
    %v181 = vunpack.c.l.b16 %v83
    %v182 = vunpack.c.h.b16 %v83
    %v183 = vunpack.c.l.b16 %v84
    %v184 = vunpack.c.h.b16 %v84
    %v185 = vunpack.c.l.b16 %v85
    %v186 = vunpack.c.h.b16 %v85
    %v187 = vunpack.c.l.b16 %v86
    %v188 = vunpack.c.h.b16 %v86
    %v189 = vunpack.c.l.b16 %v87
    %v190 = vunpack.c.h.b16 %v87
    %v191 = vunpack.c.l.b16 %v88
    %v192 = vunpack.c.h.b16 %v88
    %v193 = vunpack.c.l.b16 %v89
    %v194 = vunpack.c.h.b16 %v89
    %v195 = vunpack.c.l.b16 %v90
    %v196 = vunpack.c.h.b16 %v90
    %v197 = vunpack.c.l.b16 %v91
    %v198 = vunpack.c.h.b16 %v91
    %v199 = vunpack.c.l.b16 %v92
    %v200 = vunpack.c.h.b16 %v92
    %v201 = vunpack.c.l.b16 %v93
    %v202 = vunpack.c.h.b16 %v93
    %v203 = vunpack.c.l.b16 %v94
    %v204 = vunpack.c.h.b16 %v94
    %v205 = vunpack.c.l.b16 %v95
    %v206 = vunpack.c.h.b16 %v95
    %v207 = vunpack.c.l.b16 %v96
    %v208 = vunpack.c.h.b16 %v96
    %v209 = vunpack.c.l.b16 %v97
    %v210 = vunpack.c.h.b16 %v97
    %v211 = vunpack.c.l.b16 %v98
    %v212 = vunpack.c.h.b16 %v98
    %v213 = vunpack.c.l.b16 %v99
    %v214 = vunpack.c.h.b16 %v99
    %v215 = vunpack.c.l.b16 %v100
    %v216 = vunpack.c.h.b16 %v100
    %v217 = vunpack.c.l.b16 %v101
    %v218 = vunpack.c.h.b16 %v101
    %v219 = vunpack.c.l.b16 %v102
    %v220 = vunpack.c.h.b16 %v102
    %v221 = vunpack.c.l.b16 %v103
    %v222 = vunpack.c.h.b16 %v103
    %v223 = vunpack.c.l.b16 %v104
    %v224 = vunpack.c.h.b16 %v104
    %v225 = vunpack.c.l.b16 %v105
    %v226 = vunpack.c.h.b16 %v105
    %v227 = vunpack.c.l.b16 %v106
    %v228 = vunpack.c.h.b16 %v106
    %v229 = vunpack.c.l.b16 %v107
    %v230 = vunpack.c.h.b16 %v107
    %v231 = vunpack.c.l.b16 %v108
    %v232 = vunpack.c.h.b16 %v108
    %v233 = vpack.c.b16 %v173, %v169
    %v234 = vpack.c.b16 %v174, %v170
    %v235 = vpack.c.b16 %v175, %v171
    %v236 = vpack.c.b16 %v176, %v172
    %v237 = vpack.c.b16 %v181, %v177
    %v238 = vpack.c.b16 %v182, %v178
    %v239 = vpack.c.b16 %v183, %v179
    %v240 = vpack.c.b16 %v184, %v180
    %v241 = vpack.c.b16 %v189, %v185
    %v242 = vpack.c.b16 %v190, %v186
    %v243 = vpack.c.b16 %v191, %v187
    %v244 = vpack.c.b16 %v192, %v188
    %v245 = vpack.c.b16 %v197, %v193
    %v246 = vpack.c.b16 %v198, %v194
    %v247 = vpack.c.b16 %v199, %v195
    %v248 = vpack.c.b16 %v200, %v196
    %v249 = vpack.c.b16 %v205, %v201
    %v250 = vpack.c.b16 %v206, %v202
    %v251 = vpack.c.b16 %v207, %v203
    %v252 = vpack.c.b16 %v208, %v204
    %v253 = vpack.c.b16 %v213, %v209
    %v254 = vpack.c.b16 %v214, %v210
    %v255 = vpack.c.b16 %v215, %v211
    %v256 = vpack.c.b16 %v216, %v212
    %v257 = vpack.c.b16 %v221, %v217
    %v258 = vpack.c.b16 %v222, %v218
    %v259 = vpack.c.b16 %v223, %v219
    %v260 = vpack.c.b16 %v224, %v220
    %v261 = vpack.c.b16 %v229, %v225
    %v262 = vpack.c.b16 %v230, %v226
    %v263 = vpack.c.b16 %v231, %v227
    %v264 = vpack.c.b16 %v232, %v228
    %297 = vmatprep.subr.bf16.mxu0 %v262
    %298 = vmatpush1.bf16.msra.mxu0 %v261
    %299 = vmatprep.subr.bf16.mxu0 %v258
    %300 = vmatpush1.bf16.msra.mxu0 %v257
    %301 = vmatprep.subr.bf16.mxu0 %v254
    %302 = vmatpush1.bf16.msra.mxu0 %v253
    %303 = vmatprep.subr.bf16.mxu0 %v250
    %304 = vmatpush1.bf16.msra.mxu0 %v249
    %305 = vmatprep.subr.bf16.mxu0 %v246
    %306 = vmatpush1.bf16.msra.mxu0 %v245
    %307 = vmatprep.subr.bf16.mxu0 %v242
    %308 = vmatpush1.bf16.msra.mxu0 %v241
    %309 = vmatprep.subr.bf16.mxu0 %v238
    %310 = vmatpush1.bf16.msra.mxu0 %v237
    %311 = vmatprep.subr.bf16.mxu0 %v234
    %312 = vmatpush1.bf16.msra.mxu0 %v233
    %313 = vmatprep.subr.bf16.mxu0 0
    %314 = vmatpush2.bf16.msra.mxu0 0
    %315 = vmatprep.subr.bf16.mxu0 0
    %316 = vmatpush2.bf16.msra.mxu0 0
    %317 = vmatprep.subr.bf16.mxu0 0
    %318 = vmatpush2.bf16.msra.mxu0 0
    %319 = vmatprep.subr.bf16.mxu0 0
    %320 = vmatpush2.bf16.msra.mxu0 0
    %321 = vmatprep.subr.bf16.mxu0 0
    %322 = vmatpush2.bf16.msra.mxu0 0
    %323 = vmatprep.subr.bf16.mxu0 0
    %324 = vmatpush2.bf16.msra.mxu0 0
    %325 = vmatprep.subr.bf16.mxu0 0
    %326 = vmatpush2.bf16.msra.mxu0 0
    %327 = vmatprep.subr.bf16.mxu0 0
    %328 = vmatpush2.bf16.msra.mxu0 0
    %329 = vmatprep.mubr.bf16.mxu0 0
    %330 = vmatmul.mubr.bf16.gmra.mxu0 %v135
    %v331 = vpop.f32.mrf.mxu0
    %v332 = vadd.f32 %v114, %v331
    %v333 = vpop.f32.mrf.mxu0
    %v334 = vadd.f32 %v118, %v333
    %v335 = vpop.f32.mrf.mxu0
    %v336 = vadd.f32 %v114, %v335
    %v337 = vpop.f32.mrf.mxu0
    %v338 = vadd.f32 %v118, %v337
    %339 = vdwg.mxu0
    %340 = vmatprep.subr.bf16.mxu0 %v264
    %341 = vmatpush1.bf16.msra.mxu0 %v263
    %342 = vmatprep.subr.bf16.mxu0 %v260
    %343 = vmatpush1.bf16.msra.mxu0 %v259
    %344 = vmatprep.subr.bf16.mxu0 %v256
    %345 = vmatpush1.bf16.msra.mxu0 %v255
    %346 = vmatprep.subr.bf16.mxu0 %v252
    %347 = vmatpush1.bf16.msra.mxu0 %v251
    %348 = vmatprep.subr.bf16.mxu0 %v248
    %349 = vmatpush1.bf16.msra.mxu0 %v247
    %350 = vmatprep.subr.bf16.mxu0 %v244
    %351 = vmatpush1.bf16.msra.mxu0 %v243
    %352 = vmatprep.subr.bf16.mxu0 %v240
    %353 = vmatpush1.bf16.msra.mxu0 %v239
    %354 = vmatprep.subr.bf16.mxu0 %v236
    %355 = vmatpush1.bf16.msra.mxu0 %v235
    %356 = vmatprep.subr.bf16.mxu0 0
    %357 = vmatpush2.bf16.msra.mxu0 0
    %358 = vmatprep.subr.bf16.mxu0 0
    %359 = vmatpush2.bf16.msra.mxu0 0
    %360 = vmatprep.subr.bf16.mxu0 0
    %361 = vmatpush2.bf16.msra.mxu0 0
    %362 = vmatprep.subr.bf16.mxu0 0
    %363 = vmatpush2.bf16.msra.mxu0 0
    %364 = vmatprep.subr.bf16.mxu0 0
    %365 = vmatpush2.bf16.msra.mxu0 0
    %366 = vmatprep.subr.bf16.mxu0 0
    %367 = vmatpush2.bf16.msra.mxu0 0
    %368 = vmatprep.subr.bf16.mxu0 0
    %369 = vmatpush2.bf16.msra.mxu0 0
    %370 = vmatprep.subr.bf16.mxu0 0
    %371 = vmatpush2.bf16.msra.mxu0 0
    %372 = vmatprep.mubr.bf16.mxu0 0
    %373 = vmatmul.mubr.bf16.gmra.mxu0 %v135
    %v374 = vpop.f32.mrf.mxu0
    %v375 = vadd.f32 %v122, %v374
    %v376 = vpop.f32.mrf.mxu0
    %v377 = vadd.f32 %v126, %v376
    %v378 = vpop.f32.mrf.mxu0
    %v379 = vadd.f32 %v122, %v378
    %v380 = vpop.f32.mrf.mxu0
    %v381 = vadd.f32 %v126, %v380
    %382 = vdwg.mxu0
    %v383 = vmul.f32 %v332, 0.5
    %v384 = vmul.f32 %v334, 0.5
    %v385 = vmul.f32 %v375, 0.5
    %v386 = vmul.f32 %v377, 0.5
    %v387 = vmul.f32 %v336, 0.5
    %v388 = vmul.f32 %v338, 0.5
    %v389 = vmul.f32 %v379, 0.5
    %v390 = vmul.f32 %v381, 0.5
    %v391 = vmul.f32 %v332, 0.70710677
    %v392 = vmul.f32 %v334, 0.70710677
    %v393 = vmul.f32 %v375, 0.70710677
    %v394 = vmul.f32 %v377, 0.70710677
    %v395 = vmul.f32 %v336, 0.70710677
    %v396 = vmul.f32 %v338, 0.70710677
    %v397 = vmul.f32 %v379, 0.70710677
    %v398 = vmul.f32 %v381, 0.70710677
    %v399 = verf.f32.pop %v391
    %v400 = verf.f32.pop %v392
    %v401 = verf.f32.pop %v393
    %v402 = verf.f32.pop %v394
    %v403 = verf.f32.pop %v395
    %v404 = verf.f32.pop %v396
    %v405 = verf.f32.pop %v397
    %v406 = verf.f32.pop %v398
    %v407 = vadd.f32 %v399, 1.0
    %v408 = vadd.f32 %v400, 1.0
    %v409 = vadd.f32 %v401, 1.0
    %v410 = vadd.f32 %v402, 1.0
    %v411 = vadd.f32 %v403, 1.0
    %v412 = vadd.f32 %v404, 1.0
    %v413 = vadd.f32 %v405, 1.0
    %v414 = vadd.f32 %v406, 1.0
    %v415 = vmul.f32 %v383, %v407
    %v416 = vmul.f32 %v384, %v408
    %v417 = vmul.f32 %v385, %v409
    %v418 = vmul.f32 %v386, %v410
    %v419 = vmul.f32 %v387, %v411
    %v420 = vmul.f32 %v388, %v412
    %v421 = vmul.f32 %v389, %v413
    %v422 = vmul.f32 %v390, %v414
    %v423 = vpack.c.bf16 %v419, %v415
    %v424 = vpack.c.bf16 %v420, %v416
    %v425 = vpack.c.bf16 %v421, %v417
    %v426 = vpack.c.bf16 %v422, %v418
    %v427 = vld [vmem:[#allocation8] sm:$0xf]
    %v428 = vld [vmem:[#allocation8 + $0x4] sm:$0xf]
    %v429 = vld [vmem:[#allocation8 + $0x8] sm:$0xf]
    %v430 = vld [vmem:[#allocation8 + $0xc] sm:$0xf]
    %v431 = vld [vmem:[#allocation8 + $0x10] sm:$0xf]
    %v432 = vld [vmem:[#allocation8 + $0x14] sm:$0xf]
    %v433 = vld [vmem:[#allocation8 + $0x18] sm:$0xf]
    %v434 = vld [vmem:[#allocation8 + $0x1c] sm:$0xf]
    %v435 = vld [vmem:[#allocation8 + $0x20] sm:$0xf]
    %v436 = vld [vmem:[#allocation8 + $0x24] sm:$0xf]
    %v437 = vld [vmem:[#allocation8 + $0x28] sm:$0xf]
    %v438 = vld [vmem:[#allocation8 + $0x2c] sm:$0xf]
    %v439 = vld [vmem:[#allocation8 + $0x30] sm:$0xf]
    %v440 = vld [vmem:[#allocation8 + $0x34] sm:$0xf]
    %v441 = vld [vmem:[#allocation8 + $0x38] sm:$0xf]
    %v442 = vld [vmem:[#allocation8 + $0x3c] sm:$0xf]
    %v443 = vld [vmem:[#allocation8 + $0x40] sm:$0xf]
    %v444 = vld [vmem:[#allocation8 + $0x44] sm:$0xf]
    %v445 = vld [vmem:[#allocation8 + $0x48] sm:$0xf]
    %v446 = vld [vmem:[#allocation8 + $0x4c] sm:$0xf]
    %v447 = vld [vmem:[#allocation8 + $0x50] sm:$0xf]
    %v448 = vld [vmem:[#allocation8 + $0x54] sm:$0xf]
    %v449 = vld [vmem:[#allocation8 + $0x58] sm:$0xf]
    %v450 = vld [vmem:[#allocation8 + $0x5c] sm:$0xf]
    %v451 = vld [vmem:[#allocation8 + $0x60] sm:$0xf]
    %v452 = vld [vmem:[#allocation8 + $0x64] sm:$0xf]
    %v453 = vld [vmem:[#allocation8 + $0x68] sm:$0xf]
    %v454 = vld [vmem:[#allocation8 + $0x6c] sm:$0xf]
    %v455 = vld [vmem:[#allocation8 + $0x70] sm:$0xf]
    %v456 = vld [vmem:[#allocation8 + $0x74] sm:$0xf]
    %v457 = vld [vmem:[#allocation8 + $0x78] sm:$0xf]
    %v458 = vld [vmem:[#allocation8 + $0x7c] sm:$0xf]
    %v459 = vld [vmem:[#allocation8 + $0x80] sm:$0xf]
    %v460 = vld [vmem:[#allocation8 + $0x84] sm:$0xf]
    %v461 = vld [vmem:[#allocation8 + $0x88] sm:$0xf]
    %v462 = vld [vmem:[#allocation8 + $0x8c] sm:$0xf]
    %v463 = vld [vmem:[#allocation8 + $0x90] sm:$0xf]
    %v464 = vld [vmem:[#allocation8 + $0x94] sm:$0xf]
    %v465 = vld [vmem:[#allocation8 + $0x98] sm:$0xf]
    %v466 = vld [vmem:[#allocation8 + $0x9c] sm:$0xf]
    %v467 = vld [vmem:[#allocation8 + $0xa0] sm:$0xf]
    %v468 = vld [vmem:[#allocation8 + $0xa4] sm:$0xf]
    %v469 = vld [vmem:[#allocation8 + $0xa8] sm:$0xf]
    %v470 = vld [vmem:[#allocation8 + $0xac] sm:$0xf]
    %v471 = vld [vmem:[#allocation8 + $0xb0] sm:$0xf]
    %v472 = vld [vmem:[#allocation8 + $0xb4] sm:$0xf]
    %v473 = vld [vmem:[#allocation8 + $0xb8] sm:$0xf]
    %v474 = vld [vmem:[#allocation8 + $0xbc] sm:$0xf]
    %v475 = vld [vmem:[#allocation8 + $0xc0] sm:$0xf]
    %v476 = vld [vmem:[#allocation8 + $0xc4] sm:$0xf]
    %v477 = vld [vmem:[#allocation8 + $0xc8] sm:$0xf]
    %v478 = vld [vmem:[#allocation8 + $0xcc] sm:$0xf]
    %v479 = vld [vmem:[#allocation8 + $0xd0] sm:$0xf]
    %v480 = vld [vmem:[#allocation8 + $0xd4] sm:$0xf]
    %v481 = vld [vmem:[#allocation8 + $0xd8] sm:$0xf]
    %v482 = vld [vmem:[#allocation8 + $0xdc] sm:$0xf]
    %v483 = vld [vmem:[#allocation8 + $0xe0] sm:$0xf]
    %v484 = vld [vmem:[#allocation8 + $0xe4] sm:$0xf]
    %v485 = vld [vmem:[#allocation8 + $0xe8] sm:$0xf]
    %v486 = vld [vmem:[#allocation8 + $0xec] sm:$0xf]
    %v487 = vld [vmem:[#allocation8 + $0xf0] sm:$0xf]
    %v488 = vld [vmem:[#allocation8 + $0xf4] sm:$0xf]
    %v489 = vld [vmem:[#allocation8 + $0xf8] sm:$0xf]
    %v490 = vld [vmem:[#allocation8 + $0xfc] sm:$0xf]
    %v491 = vld [vmem:[%s4] sm:$0x1]
    %v493 = vlaneseq
    %v494 = vshrl.u32 %v493, 7
    %v495 = vsub.s32 0, %v494
    %v496 = vrot.slane %v491, %v495
    %v562 = vunpack.c.l.b16 %v427
    %v563 = vunpack.c.l.b16 %v428
    %v564 = vunpack.c.l.b16 %v429
    %v565 = vunpack.c.l.b16 %v430
    %v566 = vunpack.c.l.b16 %v431
    %v567 = vunpack.c.l.b16 %v432
    %v568 = vunpack.c.l.b16 %v433
    %v569 = vunpack.c.l.b16 %v434
    %v570 = vunpack.c.l.b16 %v435
    %v571 = vunpack.c.l.b16 %v436
    %v572 = vunpack.c.l.b16 %v437
    %v573 = vunpack.c.l.b16 %v438
    %v574 = vunpack.c.l.b16 %v439
    %v575 = vunpack.c.l.b16 %v440
    %v576 = vunpack.c.l.b16 %v441
    %v577 = vunpack.c.l.b16 %v442
    %v578 = vunpack.c.l.b16 %v443
    %v579 = vunpack.c.l.b16 %v444
    %v580 = vunpack.c.l.b16 %v445
    %v581 = vunpack.c.l.b16 %v446
    %v582 = vunpack.c.l.b16 %v447
    %v583 = vunpack.c.l.b16 %v448
    %v584 = vunpack.c.l.b16 %v449
    %v585 = vunpack.c.l.b16 %v450
    %v586 = vunpack.c.l.b16 %v451
    %v587 = vunpack.c.l.b16 %v452
    %v588 = vunpack.c.l.b16 %v453
    %v589 = vunpack.c.l.b16 %v454
    %v590 = vunpack.c.l.b16 %v455
    %v591 = vunpack.c.l.b16 %v456
    %v592 = vunpack.c.l.b16 %v457
    %v593 = vunpack.c.l.b16 %v458
    %v594 = vunpack.c.l.b16 %v459
    %v595 = vunpack.c.l.b16 %v460
    %v596 = vunpack.c.l.b16 %v461
    %v597 = vunpack.c.l.b16 %v462
    %v598 = vunpack.c.l.b16 %v463
    %v599 = vunpack.c.l.b16 %v464
    %v600 = vunpack.c.l.b16 %v465
    %v601 = vunpack.c.l.b16 %v466
    %v602 = vunpack.c.l.b16 %v467
    %v603 = vunpack.c.l.b16 %v468
    %v604 = vunpack.c.l.b16 %v469
    %v605 = vunpack.c.l.b16 %v470
    %v606 = vunpack.c.l.b16 %v471
    %v607 = vunpack.c.l.b16 %v472
    %v608 = vunpack.c.l.b16 %v473
    %v609 = vunpack.c.l.b16 %v474
    %v610 = vunpack.c.l.b16 %v475
    %v611 = vunpack.c.l.b16 %v476
    %v612 = vunpack.c.l.b16 %v477
    %v613 = vunpack.c.l.b16 %v478
    %v614 = vunpack.c.l.b16 %v479
    %v615 = vunpack.c.l.b16 %v480
    %v616 = vunpack.c.l.b16 %v481
    %v617 = vunpack.c.l.b16 %v482
    %v618 = vunpack.c.l.b16 %v483
    %v619 = vunpack.c.l.b16 %v484
    %v620 = vunpack.c.l.b16 %v485
    %v621 = vunpack.c.l.b16 %v486
    %v622 = vunpack.c.l.b16 %v487
    %v623 = vunpack.c.l.b16 %v488
    %v624 = vunpack.c.l.b16 %v489
    %v625 = vunpack.c.l.b16 %v490
    %v626 = vpack.c.b16 %v563, %v562
    %v627 = vpack.c.b16 %v565, %v564
    %v628 = vpack.c.b16 %v567, %v566
    %v629 = vpack.c.b16 %v569, %v568
    %v630 = vpack.c.b16 %v571, %v570
    %v631 = vpack.c.b16 %v573, %v572
    %v632 = vpack.c.b16 %v575, %v574
    %v633 = vpack.c.b16 %v577, %v576
    %v634 = vpack.c.b16 %v579, %v578
    %v635 = vpack.c.b16 %v581, %v580
    %v636 = vpack.c.b16 %v583, %v582
    %v637 = vpack.c.b16 %v585, %v584
    %v638 = vpack.c.b16 %v587, %v586
    %v639 = vpack.c.b16 %v589, %v588
    %v640 = vpack.c.b16 %v591, %v590
    %v641 = vpack.c.b16 %v593, %v592
    %v642 = vpack.c.b16 %v595, %v594
    %v643 = vpack.c.b16 %v597, %v596
    %v644 = vpack.c.b16 %v599, %v598
    %v645 = vpack.c.b16 %v601, %v600
    %v646 = vpack.c.b16 %v603, %v602
    %v647 = vpack.c.b16 %v605, %v604
    %v648 = vpack.c.b16 %v607, %v606
    %v649 = vpack.c.b16 %v609, %v608
    %v650 = vpack.c.b16 %v611, %v610
    %v651 = vpack.c.b16 %v613, %v612
    %v652 = vpack.c.b16 %v615, %v614
    %v653 = vpack.c.b16 %v617, %v616
    %v654 = vpack.c.b16 %v619, %v618
    %v655 = vpack.c.b16 %v621, %v620
    %v656 = vpack.c.b16 %v623, %v622
    %v657 = vpack.c.b16 %v625, %v624
    %690 = vmatprep.subr.bf16.mxu0 0
    %691 = vmatpush1.bf16.msra.mxu0 %v633
    %692 = vmatprep.subr.bf16.mxu0 0
    %693 = vmatpush1.bf16.msra.mxu0 %v632
    %694 = vmatprep.subr.bf16.mxu0 0
    %695 = vmatpush1.bf16.msra.mxu0 %v631
    %696 = vmatprep.subr.bf16.mxu0 0
    %697 = vmatpush1.bf16.msra.mxu0 %v630
    %698 = vmatprep.subr.bf16.mxu0 0
    %699 = vmatpush1.bf16.msra.mxu0 %v629
    %700 = vmatprep.subr.bf16.mxu0 0
    %701 = vmatpush1.bf16.msra.mxu0 %v628
    %702 = vmatprep.subr.bf16.mxu0 0
    %703 = vmatpush1.bf16.msra.mxu0 %v627
    %704 = vmatprep.subr.bf16.mxu0 0
    %705 = vmatpush1.bf16.msra.mxu0 %v626
    %706 = vmatprep.subr.bf16.mxu0 0
    %707 = vmatpush2.bf16.msra.mxu0 %v641
    %708 = vmatprep.subr.bf16.mxu0 0
    %709 = vmatpush2.bf16.msra.mxu0 %v640
    %710 = vmatprep.subr.bf16.mxu0 0
    %711 = vmatpush2.bf16.msra.mxu0 %v639
    %712 = vmatprep.subr.bf16.mxu0 0
    %713 = vmatpush2.bf16.msra.mxu0 %v638
    %714 = vmatprep.subr.bf16.mxu0 0
    %715 = vmatpush2.bf16.msra.mxu0 %v637
    %716 = vmatprep.subr.bf16.mxu0 0
    %717 = vmatpush2.bf16.msra.mxu0 %v636
    %718 = vmatprep.subr.bf16.mxu0 0
    %719 = vmatpush2.bf16.msra.mxu0 %v635
    %720 = vmatprep.subr.bf16.mxu0 0
    %721 = vmatpush2.bf16.msra.mxu0 %v634
    %722 = vmatprep.mubr.bf16.mxu0 %v424
    %723 = vmatmul.mubr.bf16.gmra.mxu0 %v423
    %v724 = vpop.f32.mrf.mxu0
    %v725 = vadd.f32 %v496, %v724
    %v726 = vpop.f32.mrf.mxu0
    %v727 = vpop.f32.mrf.mxu0
    %v728 = vadd.f32 %v496, %v727
    %v729 = vpop.f32.mrf.mxu0
    %730 = vdwg.mxu0
    %731 = vmatprep.subr.bf16.mxu0 0
    %732 = vmatpush1.bf16.msra.mxu0 %v649
    %733 = vmatprep.subr.bf16.mxu0 0
    %734 = vmatpush1.bf16.msra.mxu0 %v648
    %735 = vmatprep.subr.bf16.mxu0 0
    %736 = vmatpush1.bf16.msra.mxu0 %v647
    %737 = vmatprep.subr.bf16.mxu0 0
    %738 = vmatpush1.bf16.msra.mxu0 %v646
    %739 = vmatprep.subr.bf16.mxu0 0
    %740 = vmatpush1.bf16.msra.mxu0 %v645
    %741 = vmatprep.subr.bf16.mxu0 0
    %742 = vmatpush1.bf16.msra.mxu0 %v644
    %743 = vmatprep.subr.bf16.mxu0 0
    %744 = vmatpush1.bf16.msra.mxu0 %v643
    %745 = vmatprep.subr.bf16.mxu0 0
    %746 = vmatpush1.bf16.msra.mxu0 %v642
    %747 = vmatprep.subr.bf16.mxu0 0
    %748 = vmatpush2.bf16.msra.mxu0 %v657
    %749 = vmatprep.subr.bf16.mxu0 0
    %750 = vmatpush2.bf16.msra.mxu0 %v656
    %751 = vmatprep.subr.bf16.mxu0 0
    %752 = vmatpush2.bf16.msra.mxu0 %v655
    %753 = vmatprep.subr.bf16.mxu0 0
    %754 = vmatpush2.bf16.msra.mxu0 %v654
    %755 = vmatprep.subr.bf16.mxu0 0
    %756 = vmatpush2.bf16.msra.mxu0 %v653
    %757 = vmatprep.subr.bf16.mxu0 0
    %758 = vmatpush2.bf16.msra.mxu0 %v652
    %759 = vmatprep.subr.bf16.mxu0 0
    %760 = vmatpush2.bf16.msra.mxu0 %v651
    %761 = vmatprep.subr.bf16.mxu0 0
    %762 = vmatpush2.bf16.msra.mxu0 %v650
    %763 = vmatprep.mubr.bf16.mxu0 %v426
    %764 = vmatmul.mubr.bf16.gmra.mxu0 %v425
    %v765 = vpop.f32.mrf.mxu0
    %v766 = vadd.f32 %v725, %v765
    %v767 = vpop.f32.mrf.mxu0
    %v768 = vpop.f32.mrf.mxu0
    %v769 = vadd.f32 %v728, %v768
    %v770 = vpop.f32.mrf.mxu0
    %771 = vdwg.mxu0
    %772 = vst [vmem:[#allocation10] sm:$0xff] %v766
    %773 = vst [vmem:[#allocation10 + $0x8] sm:$0xff] %v769
    // Predicated region
    $region38: #{tpu_custom_call.1} parent=1 // pred_check
      _
    $region39: #{tpu_custom_call.1} parent=1 // pred_check_branch
      %775 = sbr.rel (0) target = $region41
    $region40: #{tpu_custom_call.1} parent=1 // pred_region
      %s777 = ssub.s32 256, 256
      %778 = vsyncadd [#allocation4], %s777
      %s779 = sshll.u32 [#allocation10], 4
      %s780 = int_to_ptr.vmem [resolvable:$true] %s779
      %785 = dma.vmem_to_hbm [thread:$0]  %s780, 256, %s5, [#allocation4], 128, 128, 8
    $region41: #{tpu_custom_call.1} parent=1 // pred_fallthru
      _
    // Predicated region
    $region42: #{tpu_custom_call.1} parent=1 // pred_check
      _
    $region43: #{tpu_custom_call.1} parent=1 // pred_check_branch
      %787 = sbr.rel (0) target = $region45
    $region44: #{tpu_custom_call.1} parent=1 // pred_region
      %788 = dma.done [#allocation4], 256
    $region45: #{tpu_custom_call.1} parent=1 // pred_fallthru
      _
    %789 = vsyncpa [#allocation3], 1
    %790 = vsyncpa [#allocation6], 1
    %791 = vsyncpa [#allocation9], 1
    %792 = vsyncpa [#allocation4], 1

</llo_original>
